<compile_context>
chip_gen: v6e
topology: v6e:2x2x1
jax: 0.10.0
libtpu: 0.0.40
codegen_flags: <defaults>
</compile_context>

<pallas_src>
import functools

import jax
import jax.numpy as jnp
from jax.experimental import pallas as pl
from jax.experimental.pallas import tpu as pltpu


def _box_filter_clamped(mask, k, m):
    """Separable k x k all-ones conv with zero padding, clamped at m.  mask: (H, W)."""
    H, W = mask.shape
    pad = k >> 1
    hs = mask
    for d in range(1, pad + 1):                       # horizontal pass (lane axis)
        if d < W:
            z = jnp.zeros((H, d), mask.dtype)
            hs = hs + jnp.concatenate([mask[:, d:], z], axis=1)       # c -> mask[:, c + d]
            hs = hs + jnp.concatenate([z, mask[:, :W - d]], axis=1)   # c -> mask[:, c - d]
    out = hs
    for d in range(1, pad + 1):                       # vertical pass (sublane axis)
        if d < H:
            z = jnp.zeros((d, W), mask.dtype)
            out = out + jnp.concatenate([hs[d:, :], z], axis=0)       # r -> hs[r + d]
            out = out + jnp.concatenate([z, hs[:H - d, :]], axis=0)   # r -> hs[r - d]
    return jnp.minimum(out, float(m))


def _smooth_loss_kernel(logit_ref, edge_logit_ref, edge_target_ref,   # inputs
                        out_ref,                                      # output
                        conv_ref, smc_ref, wc_ref, acc_ref,           # scratch
                        *, beta, k, m, weight_type, loss_weight, denom):
    h_idx = pl.program_id(1)

    lg = logit_ref[0]                                  # (C, TH, W) current n / H tile
    C, TH, W = lg.shape

    # ---- once per batch element (first H tile): clamped box-filtered edge mask ----
    @pl.when(h_idx == 0)
    def _():
        et = edge_target_ref[0]                                        # (H, W)
        mask = jnp.where(et == 1.0, 1.0, 0.0).astype(jnp.float32)
        conv_ref[...] = _box_filter_clamped(mask, k, m)
        acc_ref[0] = 0.0

    # ---- channel softmax for this tile (C is a leading dim -> cheap reduction) ----
    z = lg - jnp.max(lg, axis=0, keepdims=True)
    ez = jnp.exp(z)
    sm = ez * pl.reciprocal(jnp.sum(ez, axis=0, keepdims=True), approx=False)

    # ---- edge weights for this tile (same substring branch order as PyTorch) ----
    r0 = pl.multiple_of(h_idx * TH, TH)
    conv_tile = conv_ref[pl.ds(r0, TH), :]                             # (TH, W)
    if 'gs' in weight_type:
        edge_w = conv_tile
    elif 'ps' in weight_type:
        el = edge_logit_ref[0, 0]
        edge_w = pl.reciprocal(1.0 + jnp.exp(-el), approx=False)       # sigmoid
    else:
        el = edge_logit_ref[0, 0]
        edge_pred = pl.reciprocal(1.0 + jnp.exp(-el), approx=False)
        edge_w = (edge_pred + conv_tile) * 0.5
    wts = jnp.exp(-beta * jnp.abs(edge_w))                             # (TH, W)

    # ---- replicate-padded finite differences; replicate => border term is 0 ----
    sm_right = jnp.concatenate([sm[:, :, 1:], sm[:, :, W - 1:]], axis=2)
    sm_down = jnp.concatenate([sm[:, 1:, :], sm[:, TH - 1:, :]], axis=1)
    wb = wts[None, :, :]
    partial = (jnp.sum(jnp.abs(sm_right - sm) * wb) +
               jnp.sum(jnp.abs(sm_down - sm) * wb))

    # ---- grad_y across the seam between the previous H tile and this one ----
    @pl.when(h_idx > 0)
    def _():
        seam = jnp.abs(sm[:, 0, :] - smc_ref[...]) * wc_ref[...]       # (C, W)
        acc_ref[0] = acc_ref[0] + jnp.sum(seam)

    acc_ref[0] = acc_ref[0] + partial

    # carry this tile's last row (softmax + weights) to the next grid step
    smc_ref[...] = sm[:, TH - 1, :]
    wc_ref[...] = wts[TH - 1:TH, :]

    # per-batch-element (scaled) partial loss into a lane-dense output block
    out_ref[...] = jnp.full(out_ref.shape, acc_ref[0] * (loss_weight / denom),
                            dtype=jnp.float32)


def _pick_tile_h(H, C, W, itemsize=4, block_budget_bytes=4 * 1024 * 1024):
    """Largest multiple-of-8 divisor of H whose (C, TH, W) logit block fits the budget."""
    best = None
    for th in range(8, H + 1, 8):
        if H % th == 0 and C * th * W * itemsize <= block_budget_bytes:
            best = th
    if best is None:
        best = 8 if H % 8 == 0 else H
    return best


def smooth_loss(logit, edge_logit, edge_target, *, loss_weight=10.0, beta=10.0,
                k=3, m=3, weight_type='gs', ignore_index=255, tile_h=None):
    # ignore_index / reduction are accepted for API parity; the reference forward
    # never uses them.
    del ignore_index
    logit = logit.astype(jnp.float32)
    edge_logit = edge_logit.astype(jnp.float32)
    edge_target = edge_target.astype(jnp.float32)
    N, C, H, W = logit.shape
    assert edge_logit.shape == (N, 1, H, W)
    assert edge_target.shape == (N, H, W)
    assert k % 2 == 1, "odd box-filter size expected (module default k=3)"

    if tile_h is None:
        tile_h = _pick_tile_h(H, C, W)
    assert H % tile_h == 0 and (tile_h % 8 == 0 or tile_h == H)
    ht = H // tile_h

    kernel = functools.partial(
        _smooth_loss_kernel, beta=float(beta), k=int(k), m=int(m),
        weight_type=weight_type, loss_weight=float(loss_weight),
        denom=float(N * C * H * W))

    partials = pl.pallas_call(
        kernel,
        out_shape=jax.ShapeDtypeStruct((N, 8, 128), jnp.float32),
        grid_spec=pltpu.PrefetchScalarGridSpec(
            num_scalar_prefetch=0,
            grid=(N, ht),                                  # reduction (H-tile) axis last
            in_specs=[
                pl.BlockSpec((1, C, tile_h, W), lambda n, h: (n, 0, h, 0)),
                pl.BlockSpec((1, 1, tile_h, W), lambda n, h: (n, 0, h, 0)),
                # full-H edge mask: block index constant along h -> fetched once per n
                pl.BlockSpec((1, H, W), lambda n, h: (n, 0, 0)),
            ],
            out_specs=pl.BlockSpec((1, 8, 128), lambda n, h: (n, 0, 0)),
            scratch_shapes=[
                pltpu.VMEM((H, W), jnp.float32),   # clamped box-filtered edge mask (per n)
                pltpu.VMEM((C, W), jnp.float32),   # carried softmax of previous tile's last row
                pltpu.VMEM((1, W), jnp.float32),   # carried weights of previous tile's last row
                pltpu.SMEM((1,), jnp.float32),     # running per-n partial sum
            ],
        ),
        compiler_params=pltpu.CompilerParams(
            dimension_semantics=("parallel", "arbitrary"),
            vmem_limit_bytes=32 * 1024 * 1024,
        ),
    )(logit, edge_logit, edge_target)

    return jnp.sum(partials[:, 0, 0])


def _smooth_loss_ref(logit, edge_logit, edge_target, *, loss_weight=10.0,
                     beta=10.0, k=3, m=3, weight_type='gs'):
    # pure-JAX reference mirroring the PyTorch forward
    et = jnp.where(edge_target.astype(jnp.float32) == 1.0, 1.0, 0.0)[:, None]
    pad = k >> 1
    etp = jnp.pad(et, ((0, 0), (0, 0), (pad, pad), (pad, pad)))
    N, _, H, W = et.shape
    conv = sum(etp[:, :, dy:dy + H, dx:dx + W]
               for dy in range(k) for dx in range(k))
    conv = jnp.minimum(conv, float(m))
    if 'gs' in weight_type:
        ew = conv
    elif 'ps' in weight_type:
        ew = jax.nn.sigmoid(edge_logit)
    else:
        ew = (jax.nn.sigmoid(edge_logit) + conv) / 2
    sm = jax.nn.softmax(logit.astype(jnp.float32), axis=1)
    smp = jnp.pad(sm, ((0, 0), (0, 0), (0, 1), (0, 1)), mode='edge')
    gx = jnp.abs(smp[:, :, :-1, 1:] - smp[:, :, :-1, :-1])
    gy = jnp.abs(smp[:, :, 1:, :-1] - smp[:, :, :-1, :-1])
    w = jnp.exp(-beta * jnp.abs(ew))
    return loss_weight * ((gx * w).mean() + (gy * w).mean())


if __name__ == "__main__":
    key = jax.random.PRNGKey(0)
    k1, k2, k3 = jax.random.split(key, 3)
    N, C, H, W = 2, 4, 16, 16
    logit = jax.random.normal(k1, (N, C, H, W), jnp.float32)
    edge_logit = jax.random.normal(k2, (N, 1, H, W), jnp.float32)
    edge_target = jax.random.randint(k3, (N, H, W), 0, 3).astype(jnp.int32)

    # tile_h=8 -> two H tiles per batch element, exercising the tiled/seam path.
    for wt in ('gs', 'gps'):
        got = jax.block_until_ready(
            smooth_loss(logit, edge_logit, edge_target, weight_type=wt, tile_h=8))
        want = _smooth_loss_ref(logit, edge_logit, edge_target, weight_type=wt)
        assert jnp.allclose(got, want, rtol=2e-4, atol=1e-5), (wt, got, want)

    print("KERNEL_OK")
</pallas_src>

<mosaic_0001>
module attributes {stable_mosaic.version = 11 : i64} {
  func.func @_smooth_loss_kernel(%arg0: i32, %arg1: i32, %arg2: memref<1x4x8x16xf32, #tpu.memory_space<vmem>>, %arg3: memref<1x1x8x16xf32, #tpu.memory_space<vmem>>, %arg4: memref<1x16x16xf32, #tpu.memory_space<vmem>>, %arg5: memref<1x8x128xf32, #tpu.memory_space<vmem>>, %arg6: memref<16x16xf32, #tpu.memory_space<vmem>>, %arg7: memref<4x16xf32, #tpu.memory_space<vmem>>, %arg8: memref<1x16xf32, #tpu.memory_space<vmem>>, %arg9: memref<1xf32, #tpu.memory_space<smem>>) attributes {dimension_semantics = [#tpu.dimension_semantics<parallel>, #tpu.dimension_semantics<arbitrary>], iteration_bounds = array<i64: 2, 2>, scalar_prefetch = 0 : i64, scratch_operands = 4 : i64, tpu.core_type = #tpu.core_type<tc>, window_params = [{transform_indices = @transform_0, window_bounds = array<i64: 1, 4, 8, 16>}, {transform_indices = @transform_1, window_bounds = array<i64: 1, 1, 8, 16>}, {transform_indices = @transform_2, window_bounds = array<i64: 1, 16, 16>}, {transform_indices = @transform_3, window_bounds = array<i64: 1, 8, 128>}]} {
    %c0 = arith.constant 0 : index
    %c0_0 = arith.constant 0 : index
    %c0_1 = arith.constant 0 : index
    %c0_2 = arith.constant 0 : index
    %0 = vector.load %arg2[%c0, %c0_0, %c0_1, %c0_2] : memref<1x4x8x16xf32, #tpu.memory_space<vmem>>, vector<1x4x8x16xf32>
    %1 = vector.shape_cast %0 : vector<1x4x8x16xf32> to vector<4x8x16xf32>
    %c0_i32 = arith.constant 0 : i32
    %2 = arith.cmpi eq, %arg1, %c0_i32 : i32
    %3 = arith.extui %2 : i1 to i32
    %c0_i32_3 = arith.constant 0 : i32
    %4 = arith.cmpi ne, %3, %c0_i32_3 : i32
    scf.if %4 {
      %c0_22 = arith.constant 0 : index
      %c0_23 = arith.constant 0 : index
      %c0_24 = arith.constant 0 : index
      %62 = vector.load %arg4[%c0_22, %c0_23, %c0_24] : memref<1x16x16xf32, #tpu.memory_space<vmem>>, vector<1x16x16xf32>
      %63 = vector.shape_cast %62 : vector<1x16x16xf32> to vector<16x16xf32>
      %cst_25 = arith.constant 1.000000e+00 : f32
      %64 = vector.broadcast %cst_25 : f32 to vector<16x16xf32>
      %65 = arith.cmpf oeq, %63, %64 : vector<16x16xf32>
      %cst_26 = arith.constant 1.000000e+00 : f32
      %cst_27 = arith.constant 0.000000e+00 : f32
      %66 = vector.broadcast %cst_26 : f32 to vector<16x16xf32>
      %67 = vector.broadcast %cst_27 : f32 to vector<16x16xf32>
      %68 = arith.select %65, %66, %67 : vector<16x16xi1>, vector<16x16xf32>
      %cst_28 = arith.constant 0.000000e+00 : f32
      %69 = vector.broadcast %cst_28 : f32 to vector<16x1xf32>
      %70 = vector.extract_strided_slice %68 {offsets = [0, 1], sizes = [16, 15], strides = [1, 1]} : vector<16x16xf32> to vector<16x15xf32>
      %71 = tpu.concatenate %70, %69 in 1 : vector<16x15xf32>, vector<16x1xf32> -> vector<16x16xf32>
      %72 = arith.addf %68, %71 : vector<16x16xf32>
      %73 = vector.extract_strided_slice %68 {offsets = [0, 0], sizes = [16, 15], strides = [1, 1]} : vector<16x16xf32> to vector<16x15xf32>
      %74 = tpu.concatenate %69, %73 in 1 : vector<16x1xf32>, vector<16x15xf32> -> vector<16x16xf32>
      %75 = arith.addf %72, %74 : vector<16x16xf32>
      %cst_29 = arith.constant 0.000000e+00 : f32
      %76 = vector.broadcast %cst_29 : f32 to vector<1x16xf32>
      %77 = vector.extract_strided_slice %75 {offsets = [1, 0], sizes = [15, 16], strides = [1, 1]} : vector<16x16xf32> to vector<15x16xf32>
      %78 = tpu.concatenate %77, %76 in 0 : vector<15x16xf32>, vector<1x16xf32> -> vector<16x16xf32>
      %79 = arith.addf %75, %78 : vector<16x16xf32>
      %80 = vector.extract_strided_slice %75 {offsets = [0, 0], sizes = [15, 16], strides = [1, 1]} : vector<16x16xf32> to vector<15x16xf32>
      %81 = tpu.concatenate %76, %80 in 0 : vector<1x16xf32>, vector<15x16xf32> -> vector<16x16xf32>
      %82 = arith.addf %79, %81 : vector<16x16xf32>
      %cst_30 = arith.constant 3.000000e+00 : f32
      %83 = vector.broadcast %cst_30 : f32 to vector<16x16xf32>
      %84 = arith.minimumf %82, %83 : vector<16x16xf32>
      %c0_31 = arith.constant 0 : index
      %c0_32 = arith.constant 0 : index
      %85 = vector.load %arg6[%c0_31, %c0_32] : memref<16x16xf32, #tpu.memory_space<vmem>>, vector<16x16xf32>
      tpu.vector_store %arg6[%c0_31, %c0_32], %84 {strides = array<i32>} : memref<16x16xf32, #tpu.memory_space<vmem>>, vector<16x16xf32>,
      %cst_33 = arith.constant 0.000000e+00 : f32
      %c0_34 = arith.constant 0 : index
      %86 = memref.load %arg9[%c0_34] : memref<1xf32, #tpu.memory_space<smem>>
      memref.store %cst_33, %arg9[%c0_34] : memref<1xf32, #tpu.memory_space<smem>>
    } else {
    }
    %cst = arith.constant dense<0xFF800000> : vector<8x16xf32>
    %5 = vector.multi_reduction <maximumf>, %1, %cst [0] : vector<4x8x16xf32> to vector<8x16xf32>
    %6 = vector.shape_cast %5 : vector<8x16xf32> to vector<1x8x16xf32>
    %7 = vector.broadcast %6 : vector<1x8x16xf32> to vector<4x8x16xf32>
    %8 = arith.subf %1, %7 : vector<4x8x16xf32>
    %9 = math.exp %8 : vector<4x8x16xf32>
    %cst_4 = arith.constant dense<0.000000e+00> : vector<8x16xf32>
    %10 = vector.multi_reduction <add>, %9, %cst_4 [0] : vector<4x8x16xf32> to vector<8x16xf32>
    %11 = vector.shape_cast %10 : vector<8x16xf32> to vector<1x8x16xf32>
    %12 = tpu.reciprocal %11 : vector<1x8x16xf32> -> vector<1x8x16xf32>
    %13 = vector.broadcast %12 : vector<1x8x16xf32> to vector<4x8x16xf32>
    %14 = arith.mulf %9, %13 : vector<4x8x16xf32>
    %c8_i32 = arith.constant 8 : i32
    %15 = arith.muli %arg1, %c8_i32 : i32
    %16 = tpu.assume_multiple %15, 8 : i32
    %17 = arith.index_cast %16 : i32 to index
    %c0_5 = arith.constant 0 : index
    %18 = vector.load %arg6[%17, %c0_5] : memref<16x16xf32, #tpu.memory_space<vmem>>, vector<8x16xf32>
    %19 = math.absf %18 : vector<8x16xf32>
    %cst_6 = arith.constant -1.000000e+01 : f32
    %20 = vector.broadcast %cst_6 : f32 to vector<8x16xf32>
    %21 = arith.mulf %20, %19 : vector<8x16xf32>
    %22 = math.exp %21 : vector<8x16xf32>
    %23 = vector.extract_strided_slice %14 {offsets = [0, 0, 1], sizes = [4, 8, 15], strides = [1, 1, 1]} : vector<4x8x16xf32> to vector<4x8x15xf32>
    %24 = vector.extract_strided_slice %14 {offsets = [0, 0, 15], sizes = [4, 8, 1], strides = [1, 1, 1]} : vector<4x8x16xf32> to vector<4x8x1xf32>
    %25 = tpu.concatenate %23, %24 in 2 : vector<4x8x15xf32>, vector<4x8x1xf32> -> vector<4x8x16xf32>
    %26 = vector.extract_strided_slice %14 {offsets = [0, 1, 0], sizes = [4, 7, 16], strides = [1, 1, 1]} : vector<4x8x16xf32> to vector<4x7x16xf32>
    %27 = vector.extract_strided_slice %14 {offsets = [0, 7, 0], sizes = [4, 1, 16], strides = [1, 1, 1]} : vector<4x8x16xf32> to vector<4x1x16xf32>
    %28 = tpu.concatenate %26, %27 in 1 : vector<4x7x16xf32>, vector<4x1x16xf32> -> vector<4x8x16xf32>
    %29 = vector.shape_cast %22 : vector<8x16xf32> to vector<1x8x16xf32>
    %30 = arith.subf %25, %14 : vector<4x8x16xf32>
    %31 = math.absf %30 : vector<4x8x16xf32>
    %32 = vector.broadcast %29 : vector<1x8x16xf32> to vector<4x8x16xf32>
    %33 = arith.mulf %31, %32 : vector<4x8x16xf32>
    %34 = vector.shape_cast %33 : vector<4x8x16xf32> to vector<1x4x8x16xf32>
    %cst_7 = arith.constant dense<0.000000e+00> : vector<1xf32>
    %35 = vector.multi_reduction <add>, %34, %cst_7 [1, 2, 3] : vector<1x4x8x16xf32> to vector<1xf32>
    %36 = vector.shape_cast %35 : vector<1xf32> to vector<1x1x1x1xf32>
    %37 = vector.extract %36[0, 0, 0, 0] : f32 from vector<1x1x1x1xf32>
    %38 = arith.subf %28, %14 : vector<4x8x16xf32>
    %39 = math.absf %38 : vector<4x8x16xf32>
    %40 = vector.broadcast %29 : vector<1x8x16xf32> to vector<4x8x16xf32>
    %41 = arith.mulf %39, %40 : vector<4x8x16xf32>
    %42 = vector.shape_cast %41 : vector<4x8x16xf32> to vector<1x4x8x16xf32>
    %cst_8 = arith.constant dense<0.000000e+00> : vector<1xf32>
    %43 = vector.multi_reduction <add>, %42, %cst_8 [1, 2, 3] : vector<1x4x8x16xf32> to vector<1xf32>
    %44 = vector.shape_cast %43 : vector<1xf32> to vector<1x1x1x1xf32>
    %45 = vector.extract %44[0, 0, 0, 0] : f32 from vector<1x1x1x1xf32>
    %46 = arith.addf %37, %45 : f32
    %c0_i32_9 = arith.constant 0 : i32
    %47 = arith.cmpi sgt, %arg1, %c0_i32_9 : i32
    %48 = arith.extui %47 : i1 to i32
    %c0_i32_10 = arith.constant 0 : i32
    %49 = arith.cmpi ne, %48, %c0_i32_10 : i32
    scf.if %49 {
      %62 = vector.extract_strided_slice %14 {offsets = [0, 0, 0], sizes = [4, 1, 16], strides = [1, 1, 1]} : vector<4x8x16xf32> to vector<4x1x16xf32>
      %63 = vector.shape_cast %62 : vector<4x1x16xf32> to vector<4x16xf32>
      %c0_22 = arith.constant 0 : index
      %c0_23 = arith.constant 0 : index
      %64 = vector.load %arg7[%c0_22, %c0_23] : memref<4x16xf32, #tpu.memory_space<vmem>>, vector<4x16xf32>
      %65 = arith.subf %63, %64 : vector<4x16xf32>
      %66 = math.absf %65 : vector<4x16xf32>
      %c0_24 = arith.constant 0 : index
      %c0_25 = arith.constant 0 : index
      %67 = vector.load %arg8[%c0_24, %c0_25] : memref<1x16xf32, #tpu.memory_space<vmem>>, vector<1x16xf32>
      %68 = vector.broadcast %67 : vector<1x16xf32> to vector<4x16xf32>
      %69 = arith.mulf %66, %68 : vector<4x16xf32>
      %c0_26 = arith.constant 0 : index
      %70 = memref.load %arg9[%c0_26] : memref<1xf32, #tpu.memory_space<smem>>
      %71 = vector.shape_cast %69 : vector<4x16xf32> to vector<1x4x16xf32>
      %cst_27 = arith.constant dense<0.000000e+00> : vector<1xf32>
      %72 = vector.multi_reduction <add>, %71, %cst_27 [1, 2] : vector<1x4x16xf32> to vector<1xf32>
      %73 = vector.shape_cast %72 : vector<1xf32> to vector<1x1x1xf32>
      %74 = vector.extract %73[0, 0, 0] : f32 from vector<1x1x1xf32>
      %75 = arith.addf %70, %74 : f32
      %c0_28 = arith.constant 0 : index
      %76 = memref.load %arg9[%c0_28] : memref<1xf32, #tpu.memory_space<smem>>
      memref.store %75, %arg9[%c0_28] : memref<1xf32, #tpu.memory_space<smem>>
    } else {
    }
    %c0_11 = arith.constant 0 : index
    %50 = memref.load %arg9[%c0_11] : memref<1xf32, #tpu.memory_space<smem>>
    %51 = arith.addf %50, %46 : f32
    %c0_12 = arith.constant 0 : index
    %52 = memref.load %arg9[%c0_12] : memref<1xf32, #tpu.memory_space<smem>>
    memref.store %51, %arg9[%c0_12] : memref<1xf32, #tpu.memory_space<smem>>
    %53 = vector.extract_strided_slice %14 {offsets = [0, 7, 0], sizes = [4, 1, 16], strides = [1, 1, 1]} : vector<4x8x16xf32> to vector<4x1x16xf32>
    %54 = vector.shape_cast %53 : vector<4x1x16xf32> to vector<4x16xf32>
    %c0_13 = arith.constant 0 : index
    %c0_14 = arith.constant 0 : index
    %55 = vector.load %arg7[%c0_13, %c0_14] : memref<4x16xf32, #tpu.memory_space<vmem>>, vector<4x16xf32>
    tpu.vector_store %arg7[%c0_13, %c0_14], %54 {strides = array<i32>} : memref<4x16xf32, #tpu.memory_space<vmem>>, vector<4x16xf32>,
    %56 = vector.extract_strided_slice %22 {offsets = [7, 0], sizes = [1, 16], strides = [1, 1]} : vector<8x16xf32> to vector<1x16xf32>
    %c0_15 = arith.constant 0 : index
    %c0_16 = arith.constant 0 : index
    %57 = vector.load %arg8[%c0_15, %c0_16] : memref<1x16xf32, #tpu.memory_space<vmem>>, vector<1x16xf32>
    tpu.vector_store %arg8[%c0_15, %c0_16], %56 {strides = array<i32>} : memref<1x16xf32, #tpu.memory_space<vmem>>, vector<1x16xf32>,
    %c0_17 = arith.constant 0 : index
    %58 = memref.load %arg9[%c0_17] : memref<1xf32, #tpu.memory_space<smem>>
    %cst_18 = arith.constant 0.0048828125 : f32
    %59 = arith.mulf %58, %cst_18 : f32
    %60 = vector.broadcast %59 : f32 to vector<1x8x128xf32>
    %c0_19 = arith.constant 0 : index
    %c0_20 = arith.constant 0 : index
    %c0_21 = arith.constant 0 : index
    %61 = vector.load %arg5[%c0_19, %c0_20, %c0_21] : memref<1x8x128xf32, #tpu.memory_space<vmem>>, vector<1x8x128xf32>
    tpu.vector_store %arg5[%c0_19, %c0_20, %c0_21], %60 {strides = array<i32>} : memref<1x8x128xf32, #tpu.memory_space<vmem>>, vector<1x8x128xf32>,
    return
  }
  func.func @transform_0(%arg0: i32, %arg1: i32) -> (i32, i32, i32, i32) {
    %c0_i32 = arith.constant 0 : i32
    %c0_i32_0 = arith.constant 0 : i32
    %c0_i32_1 = arith.constant 0 : i32
    return %arg0, %c0_i32, %arg1, %c0_i32_0 : i32, i32, i32, i32
  }
  func.func @transform_1(%arg0: i32, %arg1: i32) -> (i32, i32, i32, i32) {
    %c0_i32 = arith.constant 0 : i32
    %c0_i32_0 = arith.constant 0 : i32
    %c0_i32_1 = arith.constant 0 : i32
    return %arg0, %c0_i32, %arg1, %c0_i32_0 : i32, i32, i32, i32
  }
  func.func @transform_2(%arg0: i32, %arg1: i32) -> (i32, i32, i32) {
    %c0_i32 = arith.constant 0 : i32
    %c0_i32_0 = arith.constant 0 : i32
    %c0_i32_1 = arith.constant 0 : i32
    return %arg0, %c0_i32, %c0_i32_0 : i32, i32, i32
  }
  func.func @transform_3(%arg0: i32, %arg1: i32) -> (i32, i32, i32) {
    %c0_i32 = arith.constant 0 : i32
    %c0_i32_0 = arith.constant 0 : i32
    %c0_i32_1 = arith.constant 0 : i32
    return %arg0, %c0_i32, %c0_i32_0 : i32, i32, i32
  }
}

</mosaic_0001>

<llo_original>
// kernel: tpu_custom_call.1
$region0: #{tpu_custom_call.1}
  #allocation0 [shape = 'u32[]', space=smem, size = 0x4, offset = 0x4, fixed_abs, tag = 'smem constant byte address 0x4 - core index']
  #allocation1 [shape = 'u32[144,128]{1,0:T(1,128)}', space=vmem, size = 0x12000, scoped, tag = 'internal scratch']
  #allocation2 [shape = 'f32[16,16]{1,0:T(8,128)}', space=vmem, size = 0x2000, scoped, tag = 'scratch operand']
  #allocation3 [shape = 'f32[4,16]{1,0:T(4,128)}', space=vmem, size = 0x800, scoped, tag = 'scratch operand']
  #allocation4 [shape = 'f32[1,16]{1,0:T(1,128)}', space=vmem, size = 0x200, scoped, tag = 'scratch operand']
  #allocation5 [shape = 'f32[1]{0:T(128)}', space=smem, size = 0x200, scoped, tag = 'scratch operand']
  %s0 = inlined_call_operand.hbm [shape: f32[2,4,16,16], index: 0, kind: input, shape index: {}]
  %s1 = inlined_call_operand.hbm [shape: f32[2,1,16,16], index: 1, kind: input, shape index: {}]
  %s2 = inlined_call_operand.hbm [shape: f32[2,16,16], index: 2, kind: input, shape index: {}]
  %s3 = inlined_call_operand.hbm [shape: f32[2,8,128], index: 3, kind: output, shape index: {}]
  %s4 = sld [smem:[#allocation0]]
  $region65: #{tpu_custom_call.1} parent=0
    _
  %s6 = ssub.s32 1, %s4
  %s7 = scalar_select 0, %s6, %s4
  $region1: #{tpu_custom_call.1} parent=0
    #allocation6 [shape = 'u8[32768]{0}', space=vmem, size = 0x8000, scoped, tag = 'input window, operand 0']
    #allocation7 [shape = 's32[2]{0}', space=sflag, size = 0x8, scoped, tag = 'scoped memory for tpu_custom_call.1']
    #allocation8 [shape = 's32[2]{0}', space=sflag, size = 0x8, scoped, tag = 'scoped memory for tpu_custom_call.1']
    #allocation9 [shape = 'u8[8192]{0}', space=vmem, size = 0x2000, scoped, tag = 'input window, operand 1']
    #allocation10 [shape = 's32[2]{0}', space=sflag, size = 0x8, scoped, tag = 'scoped memory for tpu_custom_call.1']
    #allocation11 [shape = 'u8[16384]{0}', space=vmem, size = 0x4000, scoped, tag = 'input window, operand 2']
    #allocation12 [shape = 'u8[8192]{0}', space=vmem, size = 0x2000, scoped, tag = 'output window, operand 0']
    %8 = vsyncpa [#allocation7], 0
    %s9 = scalar_lea.sflag [#allocation7], 1
    %10 = vsyncpa %s9, 0
    %11 = vsyncpa [#allocation10], 0
    %s12 = scalar_lea.sflag [#allocation10], 1
    %13 = vsyncpa %s12, 0
    %14 = vsyncpa [#allocation8], 0
    %s15 = scalar_lea.sflag [#allocation8], 1
    %16 = vsyncpa %s15, 0
    loop: start=0, step=1, limit=6
    $region2: #{tpu_custom_call.1} parent=1 // loop_pre_header
      _
    $region3: #{tpu_custom_call.1} parent=1 // loop_header
      %s18 = sphi 0, %s22
      %p19 = scmp.ge.s32.totalorder %s18, 6
      %s25 = sphi 0, %s37
      %s26 = sphi 0, %s33
      %s27 = sphi 0, %s25
      %s28 = sphi 0, %s26
      %s29 = sphi 0, %s27
      %s30 = sphi 0, %s28
      %s42 = sphi 0, %s44
      %s45 = sphi 0, %s42
      %s46 = sphi 0, %s45
      %s62 = sphi 0, %s46
      %s70 = sphi 0, %s72
      %s73 = sphi 0, %s70
      %s74 = sphi 0, %s73
      %s90 = sphi 0, %s74
      %s96 = sphi 0, %s98
      %s99 = sphi 0, %s96
      %s100 = sphi 0, %s99
      %s116 = sphi 0, %s100
      %s122 = sphi 0, %s124
      %s125 = sphi 0, %s122
      %s126 = sphi 0, %s125
      %s142 = sphi 0, %s126
    $region4: #{tpu_custom_call.1} parent=1 // loop_header_branch
      %21 = sbr.rel (%p19) target = $region8
    $region5: #{tpu_custom_call.1} parent=1 // loop_body
      %s23 = ssub.s32 %s18, 1
      %s24 = ssub.s32 %s18, 2
      %s31 = sadd.s32 1, %s26
      %p32 = scmp.ge.s32.totalorder %s31, 2
      %s33 = scalar_select %p32, 0, %s31
      %s34 = sadd.s32 1, %s25
      %s35 = scalar_select %p32, %s34, %s25
      %p36 = scmp.ge.s32.totalorder %s35, 2
      %s37 = scalar_select %p36, 0, %s35
      %s38 = ssub.s32 %s25, %s37
      %s39 = ssub.s32 %s26, %s33
      %s40 = sor.u32 %s38, %s39
      %p41 = scmp.eq.s32.totalorder %s40, 0
      %s43 = sadd.s32 %s42, 1
      %s44 = scalar_select %p41, %s42, %s43
      %p47 = pneg %p41
      %p48 = scmp.eq.s32.totalorder %s18, 3
      %p49 = por %p47, %p48
      %p50 = scmp.ne.s32.totalorder %s42, %s45
      %p51 = scmp.eq.s32.totalorder %s18, 0
      %p52 = por %p50, %p51
      %p53 = scmp.ne.s32.totalorder %s42, %s45
      %p54 = scmp.eq.s32.totalorder %s23, 3
      %p55 = por %p53, %p54
      %p56 = scmp.ne.s32.totalorder %s45, %s46
      %p57 = scmp.eq.s32.totalorder %s23, 0
      %p58 = por %p56, %p57
      %p59 = scmp.ne.s32.totalorder %s45, %s46
      %p60 = scmp.eq.s32.totalorder %s24, 3
      %p61 = por %p59, %p60
      %p63 = scmp.ne.s32.totalorder %s46, %s62
      %p64 = scmp.eq.s32.totalorder %s24, 0
      %p65 = por %p63, %p64
      %s66 = ssub.s32 %s25, %s37
      %s67 = ssub.s32 %s26, %s33
      %s68 = sor.u32 %s66, %s67
      %p69 = scmp.eq.s32.totalorder %s68, 0
      %s71 = sadd.s32 %s70, 1
      %s72 = scalar_select %p69, %s70, %s71
      %p75 = pneg %p69
      %p76 = scmp.eq.s32.totalorder %s18, 3
      %p77 = por %p75, %p76
      %p78 = scmp.ne.s32.totalorder %s70, %s73
      %p79 = scmp.eq.s32.totalorder %s18, 0
      %p80 = por %p78, %p79
      %p81 = scmp.ne.s32.totalorder %s70, %s73
      %p82 = scmp.eq.s32.totalorder %s23, 3
      %p83 = por %p81, %p82
      %p84 = scmp.ne.s32.totalorder %s73, %s74
      %p85 = scmp.eq.s32.totalorder %s23, 0
      %p86 = por %p84, %p85
      %p87 = scmp.ne.s32.totalorder %s73, %s74
      %p88 = scmp.eq.s32.totalorder %s24, 3
      %p89 = por %p87, %p88
      %p91 = scmp.ne.s32.totalorder %s74, %s90
      %p92 = scmp.eq.s32.totalorder %s24, 0
      %p93 = por %p91, %p92
      %s94 = ssub.s32 %s25, %s37
      %p95 = scmp.eq.s32.totalorder %s94, 0
      %s97 = sadd.s32 %s96, 1
      %s98 = scalar_select %p95, %s96, %s97
      %p101 = pneg %p95
      %p102 = scmp.eq.s32.totalorder %s18, 3
      %p103 = por %p101, %p102
      %p104 = scmp.ne.s32.totalorder %s96, %s99
      %p105 = scmp.eq.s32.totalorder %s18, 0
      %p106 = por %p104, %p105
      %p107 = scmp.ne.s32.totalorder %s96, %s99
      %p108 = scmp.eq.s32.totalorder %s23, 3
      %p109 = por %p107, %p108
      %p110 = scmp.ne.s32.totalorder %s99, %s100
      %p111 = scmp.eq.s32.totalorder %s23, 0
      %p112 = por %p110, %p111
      %p113 = scmp.ne.s32.totalorder %s99, %s100
      %p114 = scmp.eq.s32.totalorder %s24, 3
      %p115 = por %p113, %p114
      %p117 = scmp.ne.s32.totalorder %s100, %s116
      %p118 = scmp.eq.s32.totalorder %s24, 0
      %p119 = por %p117, %p118
      %s120 = ssub.s32 %s25, %s37
      %p121 = scmp.eq.s32.totalorder %s120, 0
      %s123 = sadd.s32 %s122, 1
      %s124 = scalar_select %p121, %s122, %s123
      %p127 = pneg %p121
      %p128 = scmp.eq.s32.totalorder %s18, 3
      %p129 = por %p127, %p128
      %p130 = scmp.ne.s32.totalorder %s122, %s125
      %p131 = scmp.eq.s32.totalorder %s18, 0
      %p132 = por %p130, %p131
      %p133 = scmp.ne.s32.totalorder %s122, %s125
      %p134 = scmp.eq.s32.totalorder %s23, 3
      %p135 = por %p133, %p134
      %p136 = scmp.ne.s32.totalorder %s125, %s126
      %p137 = scmp.eq.s32.totalorder %s23, 0
      %p138 = por %p136, %p137
      %p139 = scmp.ne.s32.totalorder %s125, %s126
      %p140 = scmp.eq.s32.totalorder %s24, 3
      %p141 = por %p139, %p140
      %p143 = scmp.ne.s32.totalorder %s126, %s142
      %p144 = scmp.eq.s32.totalorder %s24, 0
      %p145 = por %p143, %p144
      %p146 = scmp.le.s32.totalorder 1, %s18
      %p147 = scmp.lt.s32.totalorder %s18, 5
      %p148 = pnand %p146, %p147
      %p149 = pneg %p148
      // Predicated region
      $region9: #{tpu_custom_call.1} parent=5 // pred_check
        _
      $region10: #{tpu_custom_call.1} parent=5 // pred_check_branch
        %151 = sbr.rel (%p148) target = $region12
      $region11: #{tpu_custom_call.1} parent=5 // pred_region
        %s152 = ssub.s32 %s18, 1
      $region12: #{tpu_custom_call.1} parent=5 // pred_fallthru
        _
      %p153 = scmp.lt.s32.totalorder %s18, 4
      // Predicated region
      $region13: #{tpu_custom_call.1} parent=5 // pred_check
        %p154 = pneg %p153
      $region14: #{tpu_custom_call.1} parent=5 // pred_check_branch
        %156 = sbr.rel (%p154) target = $region16
      $region15: #{tpu_custom_call.1} parent=5 // pred_region
        // Predicated region
        $region17: #{tpu_custom_call.1} parent=15 // pred_check
          %p157 = pneg %p52
        $region18: #{tpu_custom_call.1} parent=15 // pred_check_branch
          %159 = sbr.rel (%p157) target = $region20
        $region19: #{tpu_custom_call.1} parent=15 // pred_region
          %s160 = sand.u32 %s42, 1
          %s161 = scalar_lea.sflag [#allocation7], %s160
          %s162 = sand.u32 %s42, 1
          %s163 = smul.addr %s162, 32
          %s164 = scalar_lea.vmem [#allocation6], %s163
          %s166 = ssub.s32 512, 512
          %167 = vsyncadd %s161, %s166
          %s168 = smul.addr %s25, 8
          %s169 = sadd.s32 %s26, %s168
          %s170 = smul.addr %s169, 128
          %s171 = scalar_lea.hbm %s0, %s170
          %s172 = sshll.u32 %s164, 4
          %s173 = int_to_ptr.vmem [resolvable:$true] %s172
          %178 = dma.hbm_to_vmem [thread:$0]  %s171, 512, %s173, %s161, 256, 128, 8
        $region20: #{tpu_custom_call.1} parent=15 // pred_fallthru
          _
        // Predicated region
        $region21: #{tpu_custom_call.1} parent=15 // pred_check
          %p179 = pneg %p80
        $region22: #{tpu_custom_call.1} parent=15 // pred_check_branch
          %181 = sbr.rel (%p179) target = $region24
        $region23: #{tpu_custom_call.1} parent=15 // pred_region
          %s182 = sand.u32 %s18, 1
          %s183 = scalar_lea.sflag [#allocation10], %s182
          %s184 = sand.u32 %s70, 1
          %s185 = smul.addr %s184, 8
          %s186 = scalar_lea.vmem [#allocation9], %s185
          %s188 = ssub.s32 128, 128
          %189 = vsyncadd %s183, %s188
          %s190 = smul.addr %s25, 2
          %s191 = sadd.s32 %s26, %s190
          %s192 = smul.addr %s191, 128
          %s193 = scalar_lea.hbm %s1, %s192
          %s195 = sshll.u32 %s186, 4
          %s196 = int_to_ptr.vmem [resolvable:$true] %s195
          %198 = dma.hbm_to_vmem [thread:$0]  %s193, 128, %s196, %s183
        $region24: #{tpu_custom_call.1} parent=15 // pred_fallthru
          _
        // Predicated region
        $region25: #{tpu_custom_call.1} parent=15 // pred_check
          %p199 = pneg %p106
        $region26: #{tpu_custom_call.1} parent=15 // pred_check_branch
          %201 = sbr.rel (%p199) target = $region28
        $region27: #{tpu_custom_call.1} parent=15 // pred_region
          %s202 = sand.u32 %s18, 1
          %s203 = scalar_lea.sflag [#allocation10], %s202
          %s204 = sand.u32 %s96, 1
          %s205 = smul.addr %s204, 16
          %s206 = scalar_lea.vmem [#allocation11], %s205
          %s208 = ssub.s32 256, 256
          %209 = vsyncadd %s203, %s208
          %s210 = smul.addr %s25, 2
          %s211 = smul.addr %s210, 128
          %s212 = scalar_lea.hbm %s2, %s211
          %s213 = sshll.u32 %s206, 4
          %s214 = int_to_ptr.vmem [resolvable:$true] %s213
          %219 = dma.hbm_to_vmem [thread:$0]  %s212, 256, %s214, %s203, 128, 128, 8
        $region28: #{tpu_custom_call.1} parent=15 // pred_fallthru
          _
      $region16: #{tpu_custom_call.1} parent=5 // pred_fallthru
        _
      %p220 = scmp.le.s32.totalorder 1, %s18
      %p221 = scmp.lt.s32.totalorder %s18, 5
      %p222 = pnand %p220, %p221
      %p223 = pneg %p222
      // Predicated region
      $region29: #{tpu_custom_call.1} parent=5 // pred_check
        _
      $region30: #{tpu_custom_call.1} parent=5 // pred_check_branch
        %225 = sbr.rel (%p222) target = $region32
      $region31: #{tpu_custom_call.1} parent=5 // pred_region
        %s226 = ssub.s32 %s18, 1
        %s227 = sand.u32 %s45, 1
        %s228 = scalar_lea.sflag [#allocation7], %s227
        %s229 = sand.u32 %s45, 1
        %s230 = smul.addr %s229, 32
        %s231 = scalar_lea.vmem [#allocation6], %s230
        // Predicated region
        $region33: #{tpu_custom_call.1} parent=31 // pred_check
          %p232 = pneg %p58
        $region34: #{tpu_custom_call.1} parent=31 // pred_check_branch
          %234 = sbr.rel (%p232) target = $region36
        $region35: #{tpu_custom_call.1} parent=31 // pred_region
          %235 = dma.done %s228, 512
        $region36: #{tpu_custom_call.1} parent=31 // pred_fallthru
          _
        %s236 = sand.u32 %s23, 1
        %s237 = scalar_lea.sflag [#allocation10], %s236
        %s238 = sand.u32 %s73, 1
        %s239 = smul.addr %s238, 8
        %s240 = scalar_lea.vmem [#allocation9], %s239
        // Predicated region
        $region37: #{tpu_custom_call.1} parent=31 // pred_check
          %p241 = pneg %p86
        $region38: #{tpu_custom_call.1} parent=31 // pred_check_branch
          %243 = sbr.rel (%p241) target = $region40
        $region39: #{tpu_custom_call.1} parent=31 // pred_region
          %244 = dma.done %s237, 128
        $region40: #{tpu_custom_call.1} parent=31 // pred_fallthru
          _
        %s245 = sand.u32 %s23, 1
        %s246 = scalar_lea.sflag [#allocation10], %s245
        %s247 = sand.u32 %s99, 1
        %s248 = smul.addr %s247, 16
        %s249 = scalar_lea.vmem [#allocation11], %s248
        // Predicated region
        $region41: #{tpu_custom_call.1} parent=31 // pred_check
          %p250 = pneg %p112
        $region42: #{tpu_custom_call.1} parent=31 // pred_check_branch
          %252 = sbr.rel (%p250) target = $region44
        $region43: #{tpu_custom_call.1} parent=31 // pred_region
          %253 = dma.done %s246, 256
        $region44: #{tpu_custom_call.1} parent=31 // pred_fallthru
          _
        %s254 = sand.u32 %s45, 1
        %s255 = scalar_lea.sflag [#allocation7], %s254
        %s256 = sand.u32 %s45, 1
        %s257 = smul.addr %s256, 32
        %s258 = scalar_lea.vmem [#allocation6], %s257
        %p259 = pneg %p58
        %p260 = pneg %p55
        %s261 = sand.u32 %s23, 1
        %s262 = scalar_lea.sflag [#allocation10], %s261
        %s263 = sand.u32 %s73, 1
        %s264 = smul.addr %s263, 8
        %s265 = scalar_lea.vmem [#allocation9], %s264
        %p266 = pneg %p86
        %p267 = pneg %p83
        %s268 = sand.u32 %s23, 1
        %s269 = scalar_lea.sflag [#allocation10], %s268
        %s270 = sand.u32 %s99, 1
        %s271 = smul.addr %s270, 16
        %s272 = scalar_lea.vmem [#allocation11], %s271
        %p273 = pneg %p112
        %p274 = pneg %p109
        %p275 = pneg %p138
        %p276 = pneg %p135
        %s277 = sand.u32 %s125, 1
        %s278 = scalar_lea.sflag [#allocation8], %s277
        %s279 = sand.u32 %s125, 1
        %s280 = smul.addr %s279, 8
        %s281 = scalar_lea.vmem [#allocation12], %s280
        %v282 = vld [vmem:[%s231] sm:$0xff]
        %v283 = vld [vmem:[%s231 + $0x8] sm:$0xff]
        %v284 = vld [vmem:[%s231 + $0x10] sm:$0xff]
        %v285 = vld [vmem:[%s231 + $0x18] sm:$0xff]
        %p286 = scmp.eq.s32.totalorder %s28, 0
        // Predicated region
        $region45: #{tpu_custom_call.1} parent=31 // pred_check
          %p287 = pneg %p286
        $region46: #{tpu_custom_call.1} parent=31 // pred_check_branch
          %289 = sbr.rel (%p287) target = $region48
        $region47: #{tpu_custom_call.1} parent=31 // pred_region
          %v290 = vld [vmem:[%s249] sm:$0xff]
          %v291 = vld [vmem:[%s249 + $0x8] sm:$0xff]
          %vm292 = vcmp.eq.f32.partialorder %v290, 1.0
          %vm293 = vcmp.eq.f32.partialorder %v291, 1.0
          %v294 = vsel %vm292, 1.0, 0.0
          %v295 = vsel %vm293, 1.0, 0.0
          %298 = vrot.lane.b32.xlu0 %v294, 127
          %v299 = vpop.permute.xlu0 %298
          %300 = vrot.lane.b32.xlu0 %v295, 127
          %v301 = vpop.permute.xlu0 %300
          %vm304 = vcmask 121856
          %v305 = vsel %vm304, %v299, 0.0
          %v306 = vsel %vm304, %v301, 0.0
          %v307 = vadd.f32 %v294, %v305
          %v308 = vadd.f32 %v295, %v306
          %309 = vrot.lane.b32.xlu0 %v294, 1
          %v310 = vpop.permute.xlu0 %309
          %311 = vrot.lane.b32.xlu0 %v295, 1
          %v312 = vpop.permute.xlu0 %311
          %vm315 = vcmask 7168
          %v316 = vsel %vm315, 0.0, %v310
          %v317 = vsel %vm315, 0.0, %v312
          %v318 = vadd.f32 %v307, %v316
          %v319 = vadd.f32 %v308, %v317
          %vm322 = vcmask 1046528
          %v323 = vrot.slane %v318, 1
          %v324 = vrot.slane %v319, 1
          %v325 = vsel %vm322, %v323, %v324
          %v328 = vsel %vm322, %v324, 0.0
          %v329 = vadd.f32 %v318, %v325
          %v330 = vadd.f32 %v319, %v328
          %vm331 = vcmask 1040384
          %v332 = vrot.slane %v318, 7
          %v333 = vrot.slane %v319, 7
          %v334 = vsel %vm331, %v332, %v333
          %v337 = vsel %vm331, 0.0, %v332
          %v338 = vadd.f32 %v329, %v337
          %v339 = vadd.f32 %v330, %v334
          %v340 = vmin.f32 %v338, 3.0
          %v341 = vmin.f32 %v339, 3.0
          %vm342 = vcmask 130048
          %343 = vst.msk [vmem:[#allocation2] sm:$0xff] %vm342, %v340
          %344 = vst.msk [vmem:[#allocation2 + $0x8] sm:$0xff] %vm342, %v341
          %s345 = scalar_lea.smem [#allocation5], 0
          %346 = sst [smem:[%s345]] 0.0
        $region48: #{tpu_custom_call.1} parent=31 // pred_fallthru
          _
        %vm347 = vcmask 130048
        %v348 = vsel %vm347, %v282, -inf
        %v349 = vsel %vm347, %v283, -inf
        %v350 = vsel %vm347, %v284, -inf
        %v351 = vsel %vm347, %v285, -inf
        %v352 = vmax.f32 %v348, %v349
        %v353 = vmax.f32 %v350, %v351
        %v354 = vmax.f32 %v352, %v353
        %v355 = vsub.f32 %v282, %v354
        %v356 = vsub.f32 %v283, %v354
        %v357 = vsub.f32 %v284, %v354
        %v358 = vsub.f32 %v285, %v354
        %v359 = vmul.f32 %v355, 1.442695
        %v360 = vpow.pop %v359
        %v361 = vmul.f32 %v356, 1.442695
        %v362 = vpow.pop %v361
        %v363 = vmul.f32 %v357, 1.442695
        %v364 = vpow.pop %v363
        %v365 = vmul.f32 %v358, 1.442695
        %v366 = vpow.pop %v365
        %v367 = vsel %vm347, %v360, 0.0
        %v368 = vsel %vm347, %v362, 0.0
        %v369 = vadd.f32 %v367, %v368
        %v370 = vsel %vm347, %v364, 0.0
        %v371 = vadd.f32 %v369, %v370
        %v372 = vsel %vm347, %v366, 0.0
        %v373 = vadd.f32 %v371, %v372
        %v374 = vrcp.pop %v373
        %v375 = vmul.f32 %v360, %v374
        %v376 = vmul.f32 %v362, %v374
        %v377 = vmul.f32 %v364, %v374
        %v378 = vmul.f32 %v366, %v374
        %s379 = smul.u32 %s28, 8
        %s380 = scalar_lea.vmem [#allocation2], %s379
        %v381 = vld [vmem:[%s380] sm:$0xff]
        %v382 = vand.u32 2147483647, %v381
        %v383 = vmul.f32 %v382, -10.0
        %v384 = vmul.f32 %v383, 1.442695
        %v385 = vpow.pop %v384
        %390 = vrot.lane.b32.xlu0 %v375, 127
        %v391 = vpop.permute.xlu0 %390
        %392 = vrot.lane.b32.xlu0 %v376, 127
        %v393 = vpop.permute.xlu0 %392
        %394 = vrot.lane.b32.xlu0 %v377, 127
        %v395 = vpop.permute.xlu0 %394
        %396 = vrot.lane.b32.xlu0 %v378, 127
        %v397 = vpop.permute.xlu0 %396
        %vm402 = vcmask 121856
        %v403 = vsel %vm402, %v391, %v375
        %v404 = vsel %vm402, %v393, %v376
        %v405 = vsel %vm402, %v395, %v377
        %v406 = vsel %vm402, %v397, %v378
        %v407 = vrot.slane %v375, 1
        %v408 = vrot.slane %v376, 1
        %v409 = vrot.slane %v377, 1
        %v410 = vrot.slane %v378, 1
        %vm415 = vcmask 1046528
        %v416 = vsel %vm415, %v407, %v375
        %v417 = vsel %vm415, %v408, %v376
        %v418 = vsel %vm415, %v409, %v377
        %v419 = vsel %vm415, %v410, %v378
        %v420 = vsub.f32 %v403, %v375
        %v421 = vsub.f32 %v404, %v376
        %v422 = vsub.f32 %v405, %v377
        %v423 = vsub.f32 %v406, %v378
        %v424 = vand.u32 2147483647, %v420
        %v425 = vand.u32 2147483647, %v421
        %v426 = vand.u32 2147483647, %v422
        %v427 = vand.u32 2147483647, %v423
        %v428 = vmul.f32 %v424, %v385
        %v429 = vmul.f32 %v425, %v385
        %v430 = vmul.f32 %v426, %v385
        %v431 = vmul.f32 %v427, %v385
        %v432 = vsel %vm347, %v428, 0.0
        %v433 = vsel %vm347, %v429, 0.0
        %v434 = vadd.f32 %v432, %v433
        %v435 = vsel %vm347, %v430, 0.0
        %v436 = vadd.f32 %v434, %v435
        %v437 = vsel %vm347, %v431, 0.0
        %v438 = vadd.f32 %v436, %v437
        %439 = vadd.xlane.f32.xlu0 %v438
        %v440 = vpop.xlane.xlu0 %439
        %v441 = vrot.slane %v440, 4
        %v442 = vadd.f32 %v440, %v441
        %v443 = vrot.slane %v442, 2
        %v444 = vadd.f32 %v442, %v443
        %v445 = vrot.slane %v444, 1
        %v446 = vadd.f32 %v444, %v445
        %s447 = vtos %v446
        %v448 = vsub.f32 %v416, %v375
        %v449 = vsub.f32 %v417, %v376
        %v450 = vsub.f32 %v418, %v377
        %v451 = vsub.f32 %v419, %v378
        %v452 = vand.u32 2147483647, %v448
        %v453 = vand.u32 2147483647, %v449
        %v454 = vand.u32 2147483647, %v450
        %v455 = vand.u32 2147483647, %v451
        %v456 = vmul.f32 %v452, %v385
        %v457 = vmul.f32 %v453, %v385
        %v458 = vmul.f32 %v454, %v385
        %v459 = vmul.f32 %v455, %v385
        %v460 = vsel %vm347, %v456, 0.0
        %v461 = vsel %vm347, %v457, 0.0
        %v462 = vadd.f32 %v460, %v461
        %v463 = vsel %vm347, %v458, 0.0
        %v464 = vadd.f32 %v462, %v463
        %v465 = vsel %vm347, %v459, 0.0
        %v466 = vadd.f32 %v464, %v465
        %467 = vadd.xlane.f32.xlu0 %v466
        %v468 = vpop.xlane.xlu0 %467
        %v469 = vrot.slane %v468, 4
        %v470 = vadd.f32 %v468, %v469
        %v471 = vrot.slane %v470, 2
        %v472 = vadd.f32 %v470, %v471
        %v473 = vrot.slane %v472, 1
        %v474 = vadd.f32 %v472, %v473
        %s475 = vtos %v474
        %s476 = sadd.f32 %s447, %s475
        %p477 = scmp.gt.s32.totalorder %s28, 0
        // Predicated region
        $region49: #{tpu_custom_call.1} parent=31 // pred_check
          %p478 = pneg %p477
        $region50: #{tpu_custom_call.1} parent=31 // pred_check_branch
          %480 = sbr.rel (%p478) target = $region52
        $region51: #{tpu_custom_call.1} parent=31 // pred_region
          %v481 = vld [vmem:[#allocation3] sm:$0xf]
          %v483 = vrot.slane %v481, 1
          %v484 = vrot.slane %v481, 2
          %v485 = vrot.slane %v481, 3
          %v490 = vsub.f32 %v375, %v481
          %v491 = vsub.f32 %v376, %v483
          %v492 = vsub.f32 %v377, %v484
          %v493 = vsub.f32 %v378, %v485
          %v494 = vand.u32 2147483647, %v490
          %v495 = vand.u32 2147483647, %v491
          %v496 = vand.u32 2147483647, %v492
          %v497 = vand.u32 2147483647, %v493
          %v498 = vld [vmem:[#allocation4] sm:$0x1]
          %v500 = vlaneseq
          %v501 = vshrl.u32 %v500, 7
          %v502 = vsub.s32 0, %v501
          %v503 = vrot.slane %v498, %v502
          %v505 = vmul.f32 %v494, %v503
          %v506 = vmul.f32 %v495, %v503
          %v507 = vmul.f32 %v496, %v503
          %v508 = vmul.f32 %v497, %v503
          %s509 = sld [smem:[#allocation5]]
          %v514 = vrot.slane %v506, 7
          %vm515 = vcmask 1041409
          %v516 = vsel %vm515, %v514, %v505
          %v517 = vrot.slane %v507, 6
          %vm518 = vcmask 1042434
          %v519 = vsel %vm518, %v517, %v516
          %v520 = vrot.slane %v508, 5
          %vm521 = vcmask 1043459
          %v522 = vsel %vm521, %v520, %v519
          %vm524 = vcmask 125952
          %v525 = vsel %vm524, %v522, 0.0
          %526 = vadd.xlane.f32.xlu0 %v525
          %v527 = vpop.xlane.xlu0 %526
          %v528 = vrot.slane %v527, 4
          %v529 = vadd.f32 %v527, %v528
          %v530 = vrot.slane %v529, 2
          %v531 = vadd.f32 %v529, %v530
          %v532 = vrot.slane %v531, 1
          %v533 = vadd.f32 %v531, %v532
          %s534 = vtos %v533
          %s535 = sadd.f32 %s509, %s534
          %s536 = scalar_lea.smem [#allocation5], 0
          %537 = sst [smem:[%s536]] %s535
        $region52: #{tpu_custom_call.1} parent=31 // pred_fallthru
          _
        %s538 = sld [smem:[#allocation5]]
        %s539 = sadd.f32 %s538, %s476
        %s540 = scalar_lea.smem [#allocation5], 0
        %541 = sst [smem:[%s540]] %s539
        %v542 = vrot.slane %v376, 7
        %v543 = vrot.slane %v377, 6
        %vm544 = vcmask 1041409
        %v545 = vsel %vm544, %v543, %v542
        %v546 = vrot.slane %v378, 5
        %vm547 = vcmask 1042434
        %v548 = vsel %vm547, %v546, %v545
        %vm551 = vcmask 130055
        %552 = vst.msk [vmem:[#allocation3 - $0x7] sm:$0x80] %vm551, %v375
        %vm553 = vcmask 124928
        %554 = vst.msk [vmem:[#allocation3 + $0x1] sm:$0x7] %vm553, %v548
        %555 = vst.msk [vmem:[#allocation4 - $0x7] sm:$0x80] %vm551, %v385
        %s556 = sld [smem:[#allocation5]]
        %s557 = smul.f32 %s556, 0.0048828125
        %v558 = vstv %s557
        %559 = vst [vmem:[%s281] sm:$0xff] %v558
        %s560 = sand.u32 %s125, 1
        %s561 = scalar_lea.sflag [#allocation8], %s560
        %s562 = sand.u32 %s125, 1
        %s563 = smul.addr %s562, 8
        %s564 = scalar_lea.vmem [#allocation12], %s563
        // Predicated region
        $region53: #{tpu_custom_call.1} parent=31 // pred_check
          %p565 = pneg %p135
        $region54: #{tpu_custom_call.1} parent=31 // pred_check_branch
          %567 = sbr.rel (%p565) target = $region56
        $region55: #{tpu_custom_call.1} parent=31 // pred_region
          %s569 = ssub.s32 128, 128
          %570 = vsyncadd %s561, %s569
          %s571 = smul.addr %s27, 128
          %s572 = scalar_lea.hbm %s3, %s571
          %s574 = sshll.u32 %s564, 4
          %s575 = int_to_ptr.vmem [resolvable:$true] %s574
          %577 = dma.vmem_to_hbm [thread:$0]  %s575, 128, %s572, %s561
        $region56: #{tpu_custom_call.1} parent=31 // pred_fallthru
          _
      $region32: #{tpu_custom_call.1} parent=5 // pred_fallthru
        _
      %p578 = scmp.le.s32.totalorder 2, %s18
      // Predicated region
      $region57: #{tpu_custom_call.1} parent=5 // pred_check
        %p579 = pneg %p578
      $region58: #{tpu_custom_call.1} parent=5 // pred_check_branch
        %581 = sbr.rel (%p579) target = $region60
      $region59: #{tpu_custom_call.1} parent=5 // pred_region
        %s582 = ssub.s32 %s18, 2
        // Predicated region
        $region61: #{tpu_custom_call.1} parent=59 // pred_check
          %p583 = pneg %p141
        $region62: #{tpu_custom_call.1} parent=59 // pred_check_branch
          %585 = sbr.rel (%p583) target = $region64
        $region63: #{tpu_custom_call.1} parent=59 // pred_region
          %s586 = sand.u32 %s126, 1
          %s587 = scalar_lea.sflag [#allocation8], %s586
          %s588 = sand.u32 %s126, 1
          %s589 = smul.addr %s588, 8
          %s590 = scalar_lea.vmem [#allocation12], %s589
          %591 = dma.done %s587, 128
        $region64: #{tpu_custom_call.1} parent=59 // pred_fallthru
          _
      $region60: #{tpu_custom_call.1} parent=5 // pred_fallthru
        _
    $region6: #{tpu_custom_call.1} parent=1 // loop_footer
      %s22 = sadd.s32 1, %s18
    $region7: #{tpu_custom_call.1} parent=1 // loop_footer_branch
      %17 = sbr.rel target = $region3
    $region8: #{tpu_custom_call.1} parent=1 // loop_exit
      _
    %592 = vsyncpa [#allocation7], 1
    %s593 = scalar_lea.sflag [#allocation7], 1
    %594 = vsyncpa %s593, 1
    %595 = vsyncpa [#allocation10], 1
    %s596 = scalar_lea.sflag [#allocation10], 1
    %597 = vsyncpa %s596, 1
    %598 = vsyncpa [#allocation8], 1
    %s599 = scalar_lea.sflag [#allocation8], 1
    %600 = vsyncpa %s599, 1

</llo_original>
